<compile_context>
chip_gen: v6e
topology: v6e:2x2x1
jax: 0.10.0
libtpu: 0.0.40
codegen_flags: <defaults>
</compile_context>

<pallas_src>
import functools

import jax
import jax.numpy as jnp
from jax.experimental import pallas as pl
from jax.experimental.pallas import tpu as pltpu


def _round_up(x, m):
    return ((x + m - 1) // m) * m


def _vmem_capacity_bytes():
    """Physical VMEM per TensorCore (generation aware), with a safe fallback."""
    try:
        info = pltpu.get_tpu_info()
        cap = getattr(info, "vmem_capacity_bytes", None)
        if cap:
            return int(cap)
    except Exception:
        pass
    return 64 * 1024 * 1024  # v7x-sized (most restrictive) fallback


def _row_bytes(D, in_itemsize, out_itemsize):
    """Per-batch-row VMEM footprint of one grid step.

    Counts the double-buffered input tiles, the double-buffered output tile and
    the in-kernel f32 temporaries.  The minor (latent) dim is lane-padded to 128
    in VMEM, so small D still costs a full 128-lane row per buffer.
    """
    padded_d = _round_up(D, 128)
    return (2 * 2 * padded_d * in_itemsize   # 2 inputs x 2 pipeline buffers
            + 2 * padded_d * 4               # f32 temporaries (x and slack)
            + 2 * out_itemsize)              # (1, tb) output, double-buffered


def _choose_block_b(B, D, in_itemsize, out_itemsize, vmem_cap):
    """Pick the batch tile width (multiple of 128).

    * VMEM-derived cap (no fixed 4096 limit): ~1/3 of physical VMEM for the
      working set (~21 MiB on v7x, ~42 MiB on v5e/v6e).
    * >= 4 grid blocks when the batch allows (2 TensorCores on v7x x >= 2 steps
      each so the pipeline actually overlaps prefetch with compute).
    * Prefer a block that divides the 128-padded batch (zero wasted rows in the
      final block) unless that would more than double the number of steps.
    """
    b128 = _round_up(max(B, 1), 128)
    tile_budget = vmem_cap // 3
    cap_vmem = max(128, (tile_budget // _row_bytes(D, in_itemsize, out_itemsize)) // 128 * 128)
    blk_par = max(128, (b128 // 4) // 128 * 128)
    blk = max(128, min(cap_vmem, blk_par, b128))
    if b128 % blk:
        for cand in range(blk, blk // 2, -128):
            if b128 % cand == 0:
                blk = cand
                break
    return blk


def _mf_kernel(eu_ref, ei_ref, w_ref, o_ref):
    # eu_ref, ei_ref : (tb, D) gathered embedding rows (native dtype, batch on sublanes)
    # w_ref          : (8, D)  Linear(D,1) weight, row-replicated, grid-resident
    # o_ref          : (1, tb) lane-dense output tile
    x = eu_ref[...].astype(jnp.float32) * ei_ref[...].astype(jnp.float32)   # VPU
    # Linear(D -> 1, no bias) over the latent axis with the batch landing on the
    # 128-lane axis of the result: (8, D) . (tb, D)^T -> (8, tb).  Contracting the
    # last dims of both operands avoids any wrapper or in-kernel transpose pass;
    # replicating the weight to 8 sublanes keeps the MXU tile shape trivial, and
    # the kernel is HBM-bandwidth-bound so the skinny matmul is free.  HIGHEST
    # precision keeps full f32 accuracy (matches the f32 PyTorch Linear).
    acc = jax.lax.dot_general(
        w_ref[...].astype(jnp.float32), x,
        dimension_numbers=(((1,), (1,)), ((), ())),
        precision=jax.lax.Precision.HIGHEST,
        preferred_element_type=jnp.float32)
    o_ref[...] = acc[0:1, :].astype(o_ref.dtype)


@functools.partial(jax.jit, static_argnames=("block_b",))
def mf_forward(user, item, user_emb, item_emb, lin_w, *, block_b=None):
    """Matrix-factorization forward pass.

    user, item : int32 (B,) index vectors
    user_emb   : (n_users, D) float32 or bfloat16
    item_emb   : (n_items, D) float32 or bfloat16
    lin_w      : (1, D) (nn.Linear(D, 1, bias=False).weight)
    returns    : (B,)
    """
    B = user.shape[0]
    D = user_emb.shape[1]
    out_dtype = jnp.promote_types(jnp.promote_types(user_emb.dtype, item_emb.dtype),
                                  lin_w.dtype)

    # Embedding lookups stay as single fused XLA gathers producing (B, D) rows in
    # the tables' native dtype: no separate transpose pass, no pad copy, no f32
    # upcast copy in HBM.  (See TODO at top for full in-kernel gather fusion.)
    eu = user_emb[user]
    ei = item_emb[item]
    # Replicate the (1, D) Linear weight to a full 8-row sublane tile (tiny, once).
    w8 = jnp.broadcast_to(jnp.reshape(lin_w, (1, D)), (8, D))

    in_itemsize = jnp.dtype(user_emb.dtype).itemsize
    out_itemsize = jnp.dtype(out_dtype).itemsize
    vmem_cap = _vmem_capacity_bytes()
    if block_b is None:
        block_b = _choose_block_b(B, D, in_itemsize, out_itemsize, vmem_cap)

    grid = (pl.cdiv(B, block_b),)   # ragged batches handled by boundary masking

    vmem_need = block_b * _row_bytes(D, in_itemsize, out_itemsize) + 64 * 1024
    cp_kwargs = dict(dimension_semantics=("parallel",))
    if vmem_need > 12 * 1024 * 1024:
        # Raise the scoped-VMEM cap only when the working set needs it, leaving
        # generation-appropriate headroom (<= 5/8 of physical VMEM: ~40 MiB on
        # v7x, ~80 MiB on v5e/v6e).
        cp_kwargs["vmem_limit_bytes"] = int(min(vmem_need + vmem_need // 2,
                                                (vmem_cap * 5) // 8))

    out = pl.pallas_call(
        _mf_kernel,
        out_shape=jax.ShapeDtypeStruct((1, B), out_dtype),
        grid=grid,
        in_specs=[
            pl.BlockSpec((block_b, D), lambda i: (i, 0)),   # user-embedding rows
            pl.BlockSpec((block_b, D), lambda i: (i, 0)),   # item-embedding rows
            pl.BlockSpec((8, D), lambda i: (0, 0)),         # linear weight (resident)
        ],
        out_specs=pl.BlockSpec((1, block_b), lambda i: (0, i)),  # lane-dense output
        compiler_params=pltpu.CompilerParams(**cp_kwargs),
    )(eu, ei, w8)

    return out[0]                                            # == .view(-1)


def init_params(key, n_users, n_items, latent_dim):
    k_u, k_i, k_w = jax.random.split(key, 3)
    # nn.init.normal_(std=0.01) for both embedding tables.
    user_emb = 0.01 * jax.random.normal(k_u, (n_users, latent_dim), jnp.float32)
    item_emb = 0.01 * jax.random.normal(k_i, (n_items, latent_dim), jnp.float32)
    # nn.init.kaiming_uniform_ on (1, latent_dim): U(-b, b), b = sqrt(6 / fan_in).
    bound = float(jnp.sqrt(6.0 / latent_dim))
    lin_w = jax.random.uniform(k_w, (1, latent_dim), jnp.float32, -bound, bound)
    return user_emb, item_emb, lin_w


if __name__ == "__main__":
    key = jax.random.PRNGKey(0)
    n_users, n_items, latent_dim = 50, 40, 32

    k_params, k_user, k_item = jax.random.split(key, 3)
    user_emb, item_emb, lin_w = init_params(k_params, n_users, n_items, latent_dim)

    def reference(user, item):
        eu = user_emb[user].astype(jnp.float32)
        ei = item_emb[item].astype(jnp.float32)
        return jnp.sum(eu * ei * lin_w.reshape(1, -1), axis=1)

    # Lane-aligned batch (single block) and a ragged batch (boundary masking,
    # two grid steps, no padded HBM copy).
    for batch in (128, 200):
        k_user, k_u = jax.random.split(k_user)
        k_item, k_i = jax.random.split(k_item)
        user = jax.random.randint(k_u, (batch,), 0, n_users, jnp.int32)
        item = jax.random.randint(k_i, (batch,), 0, n_items, jnp.int32)

        out = jax.block_until_ready(mf_forward(user, item, user_emb, item_emb, lin_w))
        ref = reference(user, item)
        assert out.shape == (batch,), f"bad shape {out.shape} at batch={batch}"
        assert jnp.allclose(out, ref, atol=5e-6, rtol=1e-3), f"mismatch at batch={batch}"

    print("KERNEL_OK")
</pallas_src>

<mosaic_0001>
module attributes {stable_mosaic.version = 11 : i64} {
  func.func @_mf_kernel(%arg0: i32, %arg1: memref<128x32xf32, #tpu.memory_space<vmem>>, %arg2: memref<128x32xf32, #tpu.memory_space<vmem>>, %arg3: memref<8x32xf32, #tpu.memory_space<vmem>>, %arg4: memref<1x128xf32, #tpu.memory_space<vmem>>) attributes {dimension_semantics = [#tpu.dimension_semantics<parallel>], iteration_bounds = array<i64: 1>, scalar_prefetch = 0 : i64, scratch_operands = 0 : i64, tpu.core_type = #tpu.core_type<tc>, window_params = [{transform_indices = @transform_0, window_bounds = array<i64: 128, 32>}, {transform_indices = @transform_1, window_bounds = array<i64: 128, 32>}, {pipeline_mode = #tpu.pipeline_mode<synchronous>, transform_indices = @transform_2, window_bounds = array<i64: 8, 32>}, {transform_indices = @transform_3, window_bounds = array<i64: 1, 128>}]} {
    %c0 = arith.constant 0 : index
    %c0_0 = arith.constant 0 : index
    %0 = vector.load %arg1[%c0, %c0_0] : memref<128x32xf32, #tpu.memory_space<vmem>>, vector<128x32xf32>
    %c0_1 = arith.constant 0 : index
    %c0_2 = arith.constant 0 : index
    %1 = vector.load %arg2[%c0_1, %c0_2] : memref<128x32xf32, #tpu.memory_space<vmem>>, vector<128x32xf32>
    %2 = arith.mulf %0, %1 : vector<128x32xf32>
    %c0_3 = arith.constant 0 : index
    %c0_4 = arith.constant 0 : index
    %3 = vector.load %arg3[%c0_3, %c0_4] : memref<8x32xf32, #tpu.memory_space<vmem>>, vector<8x32xf32>
    %cst = arith.constant dense<0.000000e+00> : vector<8x128xf32>
    %4 = tpu.matmul %3, %2, %cst {dimension_numbers = #tpu.dot_dimension_numbers<[1], [1], [0], [0], [0, 0, 1, 0], [], []>, precision = #tpu.contract_precision<fp32>} : vector<8x32xf32>, vector<128x32xf32>, vector<8x128xf32> -> vector<8x128xf32>
    %5 = vector.extract_strided_slice %4 {offsets = [0, 0], sizes = [1, 128], strides = [1, 1]} : vector<8x128xf32> to vector<1x128xf32>
    %c0_5 = arith.constant 0 : index
    %c0_6 = arith.constant 0 : index
    %6 = vector.load %arg4[%c0_5, %c0_6] : memref<1x128xf32, #tpu.memory_space<vmem>>, vector<1x128xf32>
    tpu.vector_store %arg4[%c0_5, %c0_6], %5 {strides = array<i32>} : memref<1x128xf32, #tpu.memory_space<vmem>>, vector<1x128xf32>,
    return
  }
  func.func @transform_0(%arg0: i32) -> (i32, i32) {
    %c0_i32 = arith.constant 0 : i32
    %c0_i32_0 = arith.constant 0 : i32
    return %arg0, %c0_i32 : i32, i32
  }
  func.func @transform_1(%arg0: i32) -> (i32, i32) {
    %c0_i32 = arith.constant 0 : i32
    %c0_i32_0 = arith.constant 0 : i32
    return %arg0, %c0_i32 : i32, i32
  }
  func.func @transform_2(%arg0: i32) -> (i32, i32) {
    %c0_i32 = arith.constant 0 : i32
    %c0_i32_0 = arith.constant 0 : i32
    %c0_i32_1 = arith.constant 0 : i32
    return %c0_i32, %c0_i32_0 : i32, i32
  }
  func.func @transform_3(%arg0: i32) -> (i32, i32) {
    %c0_i32 = arith.constant 0 : i32
    %c0_i32_0 = arith.constant 0 : i32
    return %c0_i32, %arg0 : i32, i32
  }
}

</mosaic_0001>

<llo_original>
// kernel: mf_forward.1
$region0: #{mf_forward.1}
  #allocation0 [shape = 'u32[]', space=smem, size = 0x4, offset = 0x4, fixed_abs, tag = 'smem constant byte address 0x4 - core index']
  #allocation1 [shape = 'u32[144,128]{1,0:T(1,128)}', space=vmem, size = 0x12000, scoped, tag = 'internal scratch']
  %s0 = inlined_call_operand.vmem [shape: f32[128,32], index: 0, kind: input, shape index: {}]
  %s1 = inlined_call_operand.vmem [shape: f32[128,32], index: 1, kind: input, shape index: {}]
  %s2 = inlined_call_operand.vmem [shape: f32[8,32], index: 2, kind: input, shape index: {}]
  %s3 = inlined_call_operand.hbm [shape: f32[1,128], index: 3, kind: output, shape index: {}]
  %s4 = sld [smem:[#allocation0]]
  $region22: #{mf_forward.1} parent=0
    _
  %s6 = ssub.s32 1, %s4
  %s7 = scalar_select 0, %s6, %s4
  $region1: #{mf_forward.1} parent=0
    #allocation2 [shape = 'u8[512]{0}', space=vmem, size = 0x400, scoped, tag = 'output window, operand 0, single buffered']
    #allocation3 [shape = 's32[1]{0}', space=sflag, size = 0x4, scoped, tag = 'scoped memory for mf_forward.1']
    %8 = vsyncpa [#allocation3], 0
    // Predicated region
    $region2: #{mf_forward.1} parent=1 // pred_check
      _
    $region3: #{mf_forward.1} parent=1 // pred_check_branch
      %10 = sbr.rel (0) target = $region5
    $region4: #{mf_forward.1} parent=1 // pred_region
      _
    $region5: #{mf_forward.1} parent=1 // pred_fallthru
      _
    // Predicated region
    $region6: #{mf_forward.1} parent=1 // pred_check
      _
    $region7: #{mf_forward.1} parent=1 // pred_check_branch
      %12 = sbr.rel (0) target = $region9
    $region8: #{mf_forward.1} parent=1 // pred_region
      _
    $region9: #{mf_forward.1} parent=1 // pred_fallthru
      _
    // Predicated region
    $region10: #{mf_forward.1} parent=1 // pred_check
      _
    $region11: #{mf_forward.1} parent=1 // pred_check_branch
      %14 = sbr.rel (0) target = $region13
    $region12: #{mf_forward.1} parent=1 // pred_region
      _
    $region13: #{mf_forward.1} parent=1 // pred_fallthru
      _
    %v15 = vld [vmem:[%s0] sm:$0xff]
    %v16 = vld [vmem:[%s0 + $0x8] sm:$0xff]
    %v17 = vld [vmem:[%s0 + $0x10] sm:$0xff]
    %v18 = vld [vmem:[%s0 + $0x18] sm:$0xff]
    %v19 = vld [vmem:[%s0 + $0x20] sm:$0xff]
    %v20 = vld [vmem:[%s0 + $0x28] sm:$0xff]
    %v21 = vld [vmem:[%s0 + $0x30] sm:$0xff]
    %v22 = vld [vmem:[%s0 + $0x38] sm:$0xff]
    %v23 = vld [vmem:[%s0 + $0x40] sm:$0xff]
    %v24 = vld [vmem:[%s0 + $0x48] sm:$0xff]
    %v25 = vld [vmem:[%s0 + $0x50] sm:$0xff]
    %v26 = vld [vmem:[%s0 + $0x58] sm:$0xff]
    %v27 = vld [vmem:[%s0 + $0x60] sm:$0xff]
    %v28 = vld [vmem:[%s0 + $0x68] sm:$0xff]
    %v29 = vld [vmem:[%s0 + $0x70] sm:$0xff]
    %v30 = vld [vmem:[%s0 + $0x78] sm:$0xff]
    %v31 = vld [vmem:[%s1] sm:$0xff]
    %v32 = vld [vmem:[%s1 + $0x8] sm:$0xff]
    %v33 = vld [vmem:[%s1 + $0x10] sm:$0xff]
    %v34 = vld [vmem:[%s1 + $0x18] sm:$0xff]
    %v35 = vld [vmem:[%s1 + $0x20] sm:$0xff]
    %v36 = vld [vmem:[%s1 + $0x28] sm:$0xff]
    %v37 = vld [vmem:[%s1 + $0x30] sm:$0xff]
    %v38 = vld [vmem:[%s1 + $0x38] sm:$0xff]
    %v39 = vld [vmem:[%s1 + $0x40] sm:$0xff]
    %v40 = vld [vmem:[%s1 + $0x48] sm:$0xff]
    %v41 = vld [vmem:[%s1 + $0x50] sm:$0xff]
    %v42 = vld [vmem:[%s1 + $0x58] sm:$0xff]
    %v43 = vld [vmem:[%s1 + $0x60] sm:$0xff]
    %v44 = vld [vmem:[%s1 + $0x68] sm:$0xff]
    %v45 = vld [vmem:[%s1 + $0x70] sm:$0xff]
    %v46 = vld [vmem:[%s1 + $0x78] sm:$0xff]
    %v47 = vmul.f32 %v15, %v31
    %v48 = vmul.f32 %v16, %v32
    %v49 = vmul.f32 %v17, %v33
    %v50 = vmul.f32 %v18, %v34
    %v51 = vmul.f32 %v19, %v35
    %v52 = vmul.f32 %v20, %v36
    %v53 = vmul.f32 %v21, %v37
    %v54 = vmul.f32 %v22, %v38
    %v55 = vmul.f32 %v23, %v39
    %v56 = vmul.f32 %v24, %v40
    %v57 = vmul.f32 %v25, %v41
    %v58 = vmul.f32 %v26, %v42
    %v59 = vmul.f32 %v27, %v43
    %v60 = vmul.f32 %v28, %v44
    %v61 = vmul.f32 %v29, %v45
    %v62 = vmul.f32 %v30, %v46
    %v63 = vld [vmem:[%s2] sm:$0xff]
    %vm64 = vcmask 261120
    %v66 = vsel %vm64, %v63, 0
    %v69 = vsel %vm64, %v47, 0
    %v72 = vsel %vm64, %v48, 0
    %v75 = vsel %vm64, %v49, 0
    %v78 = vsel %vm64, %v50, 0
    %v81 = vsel %vm64, %v51, 0
    %v84 = vsel %vm64, %v52, 0
    %v87 = vsel %vm64, %v53, 0
    %v90 = vsel %vm64, %v54, 0
    %v93 = vsel %vm64, %v55, 0
    %v96 = vsel %vm64, %v56, 0
    %v99 = vsel %vm64, %v57, 0
    %v102 = vsel %vm64, %v58, 0
    %v105 = vsel %vm64, %v59, 0
    %v108 = vsel %vm64, %v60, 0
    %v111 = vsel %vm64, %v61, 0
    %v114 = vsel %vm64, %v62, 0
    %116 = vmatprep.subr.mxu0 0.0
    %v117 = vand.u32 %v114, 4294901760
    %118 = vmatpush1.xpose.msra.mxu0 %v117
    %119 = vmatprep.subr.mxu0 0.0
    %v120 = vand.u32 %v111, 4294901760
    %121 = vmatpush1.xpose.msra.mxu0 %v120
    %122 = vmatprep.subr.mxu0 0.0
    %v123 = vand.u32 %v108, 4294901760
    %124 = vmatpush1.xpose.msra.mxu0 %v123
    %125 = vmatprep.subr.mxu0 0.0
    %v126 = vand.u32 %v105, 4294901760
    %127 = vmatpush1.xpose.msra.mxu0 %v126
    %128 = vmatprep.subr.mxu0 0.0
    %v129 = vand.u32 %v102, 4294901760
    %130 = vmatpush1.xpose.msra.mxu0 %v129
    %131 = vmatprep.subr.mxu0 0.0
    %v132 = vand.u32 %v99, 4294901760
    %133 = vmatpush1.xpose.msra.mxu0 %v132
    %134 = vmatprep.subr.mxu0 0.0
    %v135 = vand.u32 %v96, 4294901760
    %136 = vmatpush1.xpose.msra.mxu0 %v135
    %137 = vmatprep.subr.mxu0 0.0
    %v138 = vand.u32 %v93, 4294901760
    %139 = vmatpush1.xpose.msra.mxu0 %v138
    %140 = vmatprep.subr.mxu0 0.0
    %v141 = vand.u32 %v90, 4294901760
    %142 = vmatpush1.xpose.msra.mxu0 %v141
    %143 = vmatprep.subr.mxu0 0.0
    %v144 = vand.u32 %v87, 4294901760
    %145 = vmatpush1.xpose.msra.mxu0 %v144
    %146 = vmatprep.subr.mxu0 0.0
    %v147 = vand.u32 %v84, 4294901760
    %148 = vmatpush1.xpose.msra.mxu0 %v147
    %149 = vmatprep.subr.mxu0 0.0
    %v150 = vand.u32 %v81, 4294901760
    %151 = vmatpush1.xpose.msra.mxu0 %v150
    %152 = vmatprep.subr.mxu0 0.0
    %v153 = vand.u32 %v78, 4294901760
    %154 = vmatpush1.xpose.msra.mxu0 %v153
    %155 = vmatprep.subr.mxu0 0.0
    %v156 = vand.u32 %v75, 4294901760
    %157 = vmatpush1.xpose.msra.mxu0 %v156
    %158 = vmatprep.subr.mxu0 0.0
    %v159 = vand.u32 %v72, 4294901760
    %160 = vmatpush1.xpose.msra.mxu0 %v159
    %161 = vmatprep.subr.mxu0 0.0
    %v162 = vand.u32 %v69, 4294901760
    %163 = vmatpush1.xpose.msra.mxu0 %v162
    %164 = vmatprep.subr.mxu0 0.0
    %165 = vmatpush2.xpose.msra.mxu0 0.0
    %166 = vmatprep.subr.mxu0 0.0
    %167 = vmatpush2.xpose.msra.mxu0 0.0
    %168 = vmatprep.subr.mxu0 0.0
    %169 = vmatpush2.xpose.msra.mxu0 0.0
    %170 = vmatprep.subr.mxu0 0.0
    %171 = vmatpush2.xpose.msra.mxu0 0.0
    %172 = vmatprep.subr.mxu0 0.0
    %173 = vmatpush2.xpose.msra.mxu0 0.0
    %174 = vmatprep.subr.mxu0 0.0
    %175 = vmatpush2.xpose.msra.mxu0 0.0
    %176 = vmatprep.subr.mxu0 0.0
    %177 = vmatpush2.xpose.msra.mxu0 0.0
    %178 = vmatprep.subr.mxu0 0.0
    %179 = vmatpush2.xpose.msra.mxu0 0.0
    %180 = vmatprep.subr.mxu0 0.0
    %181 = vmatpush2.xpose.msra.mxu0 0.0
    %182 = vmatprep.subr.mxu0 0.0
    %183 = vmatpush2.xpose.msra.mxu0 0.0
    %184 = vmatprep.subr.mxu0 0.0
    %185 = vmatpush2.xpose.msra.mxu0 0.0
    %186 = vmatprep.subr.mxu0 0.0
    %187 = vmatpush2.xpose.msra.mxu0 0.0
    %188 = vmatprep.subr.mxu0 0.0
    %189 = vmatpush2.xpose.msra.mxu0 0.0
    %190 = vmatprep.subr.mxu0 0.0
    %191 = vmatpush2.xpose.msra.mxu0 0.0
    %192 = vmatprep.subr.mxu0 0.0
    %193 = vmatpush2.xpose.msra.mxu0 0.0
    %194 = vmatprep.subr.mxu0 0.0
    %195 = vmatpush2.xpose.msra.mxu0 0.0
    %196 = vmatprep.mubr.f32.mxu0 0.0
    %v197 = vand.u32 %v66, 4294901760
    %v198 = vsub.f32 %v66, %v197
    %v199 = vand.u32 %v198, 4294901760
    %v200 = vsub.f32 %v198, %v199
    %v201 = vand.u32 %v200, 4294901760
    %202 = vmatmul.mubr.f32.gmra.mxu0 %v201
    %v203 = vpop.f32.mrf.mxu0
    %v204 = vadd.f32 0.0, %v203
    %v205 = vpop.f32.mrf.mxu0
    %206 = vdwg.mxu0
    %207 = vmatprep.subr.mxu0 0.0
    %v208 = vand.u32 %v114, 4294901760
    %v209 = vsub.f32 %v114, %v208
    %v210 = vand.u32 %v209, 4294901760
    %v211 = vsub.f32 %v209, %v210
    %v212 = vand.u32 %v211, 4294901760
    %213 = vmatpush1.xpose.msra.mxu0 %v212
    %214 = vmatprep.subr.mxu0 0.0
    %v215 = vand.u32 %v111, 4294901760
    %v216 = vsub.f32 %v111, %v215
    %v217 = vand.u32 %v216, 4294901760
    %v218 = vsub.f32 %v216, %v217
    %v219 = vand.u32 %v218, 4294901760
    %220 = vmatpush1.xpose.msra.mxu0 %v219
    %221 = vmatprep.subr.mxu0 0.0
    %v222 = vand.u32 %v108, 4294901760
    %v223 = vsub.f32 %v108, %v222
    %v224 = vand.u32 %v223, 4294901760
    %v225 = vsub.f32 %v223, %v224
    %v226 = vand.u32 %v225, 4294901760
    %227 = vmatpush1.xpose.msra.mxu0 %v226
    %228 = vmatprep.subr.mxu0 0.0
    %v229 = vand.u32 %v105, 4294901760
    %v230 = vsub.f32 %v105, %v229
    %v231 = vand.u32 %v230, 4294901760
    %v232 = vsub.f32 %v230, %v231
    %v233 = vand.u32 %v232, 4294901760
    %234 = vmatpush1.xpose.msra.mxu0 %v233
    %235 = vmatprep.subr.mxu0 0.0
    %v236 = vand.u32 %v102, 4294901760
    %v237 = vsub.f32 %v102, %v236
    %v238 = vand.u32 %v237, 4294901760
    %v239 = vsub.f32 %v237, %v238
    %v240 = vand.u32 %v239, 4294901760
    %241 = vmatpush1.xpose.msra.mxu0 %v240
    %242 = vmatprep.subr.mxu0 0.0
    %v243 = vand.u32 %v99, 4294901760
    %v244 = vsub.f32 %v99, %v243
    %v245 = vand.u32 %v244, 4294901760
    %v246 = vsub.f32 %v244, %v245
    %v247 = vand.u32 %v246, 4294901760
    %248 = vmatpush1.xpose.msra.mxu0 %v247
    %249 = vmatprep.subr.mxu0 0.0
    %v250 = vand.u32 %v96, 4294901760
    %v251 = vsub.f32 %v96, %v250
    %v252 = vand.u32 %v251, 4294901760
    %v253 = vsub.f32 %v251, %v252
    %v254 = vand.u32 %v253, 4294901760
    %255 = vmatpush1.xpose.msra.mxu0 %v254
    %256 = vmatprep.subr.mxu0 0.0
    %v257 = vand.u32 %v93, 4294901760
    %v258 = vsub.f32 %v93, %v257
    %v259 = vand.u32 %v258, 4294901760
    %v260 = vsub.f32 %v258, %v259
    %v261 = vand.u32 %v260, 4294901760
    %262 = vmatpush1.xpose.msra.mxu0 %v261
    %263 = vmatprep.subr.mxu0 0.0
    %v264 = vand.u32 %v90, 4294901760
    %v265 = vsub.f32 %v90, %v264
    %v266 = vand.u32 %v265, 4294901760
    %v267 = vsub.f32 %v265, %v266
    %v268 = vand.u32 %v267, 4294901760
    %269 = vmatpush1.xpose.msra.mxu0 %v268
    %270 = vmatprep.subr.mxu0 0.0
    %v271 = vand.u32 %v87, 4294901760
    %v272 = vsub.f32 %v87, %v271
    %v273 = vand.u32 %v272, 4294901760
    %v274 = vsub.f32 %v272, %v273
    %v275 = vand.u32 %v274, 4294901760
    %276 = vmatpush1.xpose.msra.mxu0 %v275
    %277 = vmatprep.subr.mxu0 0.0
    %v278 = vand.u32 %v84, 4294901760
    %v279 = vsub.f32 %v84, %v278
    %v280 = vand.u32 %v279, 4294901760
    %v281 = vsub.f32 %v279, %v280
    %v282 = vand.u32 %v281, 4294901760
    %283 = vmatpush1.xpose.msra.mxu0 %v282
    %284 = vmatprep.subr.mxu0 0.0
    %v285 = vand.u32 %v81, 4294901760
    %v286 = vsub.f32 %v81, %v285
    %v287 = vand.u32 %v286, 4294901760
    %v288 = vsub.f32 %v286, %v287
    %v289 = vand.u32 %v288, 4294901760
    %290 = vmatpush1.xpose.msra.mxu0 %v289
    %291 = vmatprep.subr.mxu0 0.0
    %v292 = vand.u32 %v78, 4294901760
    %v293 = vsub.f32 %v78, %v292
    %v294 = vand.u32 %v293, 4294901760
    %v295 = vsub.f32 %v293, %v294
    %v296 = vand.u32 %v295, 4294901760
    %297 = vmatpush1.xpose.msra.mxu0 %v296
    %298 = vmatprep.subr.mxu0 0.0
    %v299 = vand.u32 %v75, 4294901760
    %v300 = vsub.f32 %v75, %v299
    %v301 = vand.u32 %v300, 4294901760
    %v302 = vsub.f32 %v300, %v301
    %v303 = vand.u32 %v302, 4294901760
    %304 = vmatpush1.xpose.msra.mxu0 %v303
    %305 = vmatprep.subr.mxu0 0.0
    %v306 = vand.u32 %v72, 4294901760
    %v307 = vsub.f32 %v72, %v306
    %v308 = vand.u32 %v307, 4294901760
    %v309 = vsub.f32 %v307, %v308
    %v310 = vand.u32 %v309, 4294901760
    %311 = vmatpush1.xpose.msra.mxu0 %v310
    %312 = vmatprep.subr.mxu0 0.0
    %v313 = vand.u32 %v69, 4294901760
    %v314 = vsub.f32 %v69, %v313
    %v315 = vand.u32 %v314, 4294901760
    %v316 = vsub.f32 %v314, %v315
    %v317 = vand.u32 %v316, 4294901760
    %318 = vmatpush1.xpose.msra.mxu0 %v317
    %319 = vmatprep.subr.mxu0 0.0
    %320 = vmatpush2.xpose.msra.mxu0 0.0
    %321 = vmatprep.subr.mxu0 0.0
    %322 = vmatpush2.xpose.msra.mxu0 0.0
    %323 = vmatprep.subr.mxu0 0.0
    %324 = vmatpush2.xpose.msra.mxu0 0.0
    %325 = vmatprep.subr.mxu0 0.0
    %326 = vmatpush2.xpose.msra.mxu0 0.0
    %327 = vmatprep.subr.mxu0 0.0
    %328 = vmatpush2.xpose.msra.mxu0 0.0
    %329 = vmatprep.subr.mxu0 0.0
    %330 = vmatpush2.xpose.msra.mxu0 0.0
    %331 = vmatprep.subr.mxu0 0.0
    %332 = vmatpush2.xpose.msra.mxu0 0.0
    %333 = vmatprep.subr.mxu0 0.0
    %334 = vmatpush2.xpose.msra.mxu0 0.0
    %335 = vmatprep.subr.mxu0 0.0
    %336 = vmatpush2.xpose.msra.mxu0 0.0
    %337 = vmatprep.subr.mxu0 0.0
    %338 = vmatpush2.xpose.msra.mxu0 0.0
    %339 = vmatprep.subr.mxu0 0.0
    %340 = vmatpush2.xpose.msra.mxu0 0.0
    %341 = vmatprep.subr.mxu0 0.0
    %342 = vmatpush2.xpose.msra.mxu0 0.0
    %343 = vmatprep.subr.mxu0 0.0
    %344 = vmatpush2.xpose.msra.mxu0 0.0
    %345 = vmatprep.subr.mxu0 0.0
    %346 = vmatpush2.xpose.msra.mxu0 0.0
    %347 = vmatprep.subr.mxu0 0.0
    %348 = vmatpush2.xpose.msra.mxu0 0.0
    %349 = vmatprep.subr.mxu0 0.0
    %350 = vmatpush2.xpose.msra.mxu0 0.0
    %351 = vmatprep.mubr.f32.mxu0 0.0
    %v352 = vand.u32 %v66, 4294901760
    %353 = vmatmul.mubr.f32.gmra.mxu0 %v352
    %v354 = vpop.f32.mrf.mxu0
    %v355 = vadd.f32 %v204, %v354
    %v356 = vpop.f32.mrf.mxu0
    %357 = vdwg.mxu0
    %358 = vmatprep.subr.mxu0 0.0
    %v359 = vand.u32 %v114, 4294901760
    %v360 = vsub.f32 %v114, %v359
    %361 = vmatpush1.xpose.msra.mxu0 %v360
    %362 = vmatprep.subr.mxu0 0.0
    %v363 = vand.u32 %v111, 4294901760
    %v364 = vsub.f32 %v111, %v363
    %365 = vmatpush1.xpose.msra.mxu0 %v364
    %366 = vmatprep.subr.mxu0 0.0
    %v367 = vand.u32 %v108, 4294901760
    %v368 = vsub.f32 %v108, %v367
    %369 = vmatpush1.xpose.msra.mxu0 %v368
    %370 = vmatprep.subr.mxu0 0.0
    %v371 = vand.u32 %v105, 4294901760
    %v372 = vsub.f32 %v105, %v371
    %373 = vmatpush1.xpose.msra.mxu0 %v372
    %374 = vmatprep.subr.mxu0 0.0
    %v375 = vand.u32 %v102, 4294901760
    %v376 = vsub.f32 %v102, %v375
    %377 = vmatpush1.xpose.msra.mxu0 %v376
    %378 = vmatprep.subr.mxu0 0.0
    %v379 = vand.u32 %v99, 4294901760
    %v380 = vsub.f32 %v99, %v379
    %381 = vmatpush1.xpose.msra.mxu0 %v380
    %382 = vmatprep.subr.mxu0 0.0
    %v383 = vand.u32 %v96, 4294901760
    %v384 = vsub.f32 %v96, %v383
    %385 = vmatpush1.xpose.msra.mxu0 %v384
    %386 = vmatprep.subr.mxu0 0.0
    %v387 = vand.u32 %v93, 4294901760
    %v388 = vsub.f32 %v93, %v387
    %389 = vmatpush1.xpose.msra.mxu0 %v388
    %390 = vmatprep.subr.mxu0 0.0
    %v391 = vand.u32 %v90, 4294901760
    %v392 = vsub.f32 %v90, %v391
    %393 = vmatpush1.xpose.msra.mxu0 %v392
    %394 = vmatprep.subr.mxu0 0.0
    %v395 = vand.u32 %v87, 4294901760
    %v396 = vsub.f32 %v87, %v395
    %397 = vmatpush1.xpose.msra.mxu0 %v396
    %398 = vmatprep.subr.mxu0 0.0
    %v399 = vand.u32 %v84, 4294901760
    %v400 = vsub.f32 %v84, %v399
    %401 = vmatpush1.xpose.msra.mxu0 %v400
    %402 = vmatprep.subr.mxu0 0.0
    %v403 = vand.u32 %v81, 4294901760
    %v404 = vsub.f32 %v81, %v403
    %405 = vmatpush1.xpose.msra.mxu0 %v404
    %406 = vmatprep.subr.mxu0 0.0
    %v407 = vand.u32 %v78, 4294901760
    %v408 = vsub.f32 %v78, %v407
    %409 = vmatpush1.xpose.msra.mxu0 %v408
    %410 = vmatprep.subr.mxu0 0.0
    %v411 = vand.u32 %v75, 4294901760
    %v412 = vsub.f32 %v75, %v411
    %413 = vmatpush1.xpose.msra.mxu0 %v412
    %414 = vmatprep.subr.mxu0 0.0
    %v415 = vand.u32 %v72, 4294901760
    %v416 = vsub.f32 %v72, %v415
    %417 = vmatpush1.xpose.msra.mxu0 %v416
    %418 = vmatprep.subr.mxu0 0.0
    %v419 = vand.u32 %v69, 4294901760
    %v420 = vsub.f32 %v69, %v419
    %421 = vmatpush1.xpose.msra.mxu0 %v420
    %422 = vmatprep.subr.mxu0 0.0
    %423 = vmatpush2.xpose.msra.mxu0 0.0
    %424 = vmatprep.subr.mxu0 0.0
    %425 = vmatpush2.xpose.msra.mxu0 0.0
    %426 = vmatprep.subr.mxu0 0.0
    %427 = vmatpush2.xpose.msra.mxu0 0.0
    %428 = vmatprep.subr.mxu0 0.0
    %429 = vmatpush2.xpose.msra.mxu0 0.0
    %430 = vmatprep.subr.mxu0 0.0
    %431 = vmatpush2.xpose.msra.mxu0 0.0
    %432 = vmatprep.subr.mxu0 0.0
    %433 = vmatpush2.xpose.msra.mxu0 0.0
    %434 = vmatprep.subr.mxu0 0.0
    %435 = vmatpush2.xpose.msra.mxu0 0.0
    %436 = vmatprep.subr.mxu0 0.0
    %437 = vmatpush2.xpose.msra.mxu0 0.0
    %438 = vmatprep.subr.mxu0 0.0
    %439 = vmatpush2.xpose.msra.mxu0 0.0
    %440 = vmatprep.subr.mxu0 0.0
    %441 = vmatpush2.xpose.msra.mxu0 0.0
    %442 = vmatprep.subr.mxu0 0.0
    %443 = vmatpush2.xpose.msra.mxu0 0.0
    %444 = vmatprep.subr.mxu0 0.0
    %445 = vmatpush2.xpose.msra.mxu0 0.0
    %446 = vmatprep.subr.mxu0 0.0
    %447 = vmatpush2.xpose.msra.mxu0 0.0
    %448 = vmatprep.subr.mxu0 0.0
    %449 = vmatpush2.xpose.msra.mxu0 0.0
    %450 = vmatprep.subr.mxu0 0.0
    %451 = vmatpush2.xpose.msra.mxu0 0.0
    %452 = vmatprep.subr.mxu0 0.0
    %453 = vmatpush2.xpose.msra.mxu0 0.0
    %454 = vmatprep.mubr.f32.mxu0 0.0
    %v455 = vand.u32 %v66, 4294901760
    %v456 = vsub.f32 %v66, %v455
    %457 = vmatmul.mubr.f32.gmra.mxu0 %v456
    %v458 = vpop.f32.mrf.mxu0
    %v459 = vadd.f32 %v355, %v458
    %v460 = vpop.f32.mrf.mxu0
    %461 = vdwg.mxu0
    %462 = vmatprep.subr.mxu0 0.0
    %v463 = vand.u32 %v114, 4294901760
    %464 = vmatpush1.xpose.msra.mxu0 %v463
    %465 = vmatprep.subr.mxu0 0.0
    %v466 = vand.u32 %v111, 4294901760
    %467 = vmatpush1.xpose.msra.mxu0 %v466
    %468 = vmatprep.subr.mxu0 0.0
    %v469 = vand.u32 %v108, 4294901760
    %470 = vmatpush1.xpose.msra.mxu0 %v469
    %471 = vmatprep.subr.mxu0 0.0
    %v472 = vand.u32 %v105, 4294901760
    %473 = vmatpush1.xpose.msra.mxu0 %v472
    %474 = vmatprep.subr.mxu0 0.0
    %v475 = vand.u32 %v102, 4294901760
    %476 = vmatpush1.xpose.msra.mxu0 %v475
    %477 = vmatprep.subr.mxu0 0.0
    %v478 = vand.u32 %v99, 4294901760
    %479 = vmatpush1.xpose.msra.mxu0 %v478
    %480 = vmatprep.subr.mxu0 0.0
    %v481 = vand.u32 %v96, 4294901760
    %482 = vmatpush1.xpose.msra.mxu0 %v481
    %483 = vmatprep.subr.mxu0 0.0
    %v484 = vand.u32 %v93, 4294901760
    %485 = vmatpush1.xpose.msra.mxu0 %v484
    %486 = vmatprep.subr.mxu0 0.0
    %v487 = vand.u32 %v90, 4294901760
    %488 = vmatpush1.xpose.msra.mxu0 %v487
    %489 = vmatprep.subr.mxu0 0.0
    %v490 = vand.u32 %v87, 4294901760
    %491 = vmatpush1.xpose.msra.mxu0 %v490
    %492 = vmatprep.subr.mxu0 0.0
    %v493 = vand.u32 %v84, 4294901760
    %494 = vmatpush1.xpose.msra.mxu0 %v493
    %495 = vmatprep.subr.mxu0 0.0
    %v496 = vand.u32 %v81, 4294901760
    %497 = vmatpush1.xpose.msra.mxu0 %v496
    %498 = vmatprep.subr.mxu0 0.0
    %v499 = vand.u32 %v78, 4294901760
    %500 = vmatpush1.xpose.msra.mxu0 %v499
    %501 = vmatprep.subr.mxu0 0.0
    %v502 = vand.u32 %v75, 4294901760
    %503 = vmatpush1.xpose.msra.mxu0 %v502
    %504 = vmatprep.subr.mxu0 0.0
    %v505 = vand.u32 %v72, 4294901760
    %506 = vmatpush1.xpose.msra.mxu0 %v505
    %507 = vmatprep.subr.mxu0 0.0
    %v508 = vand.u32 %v69, 4294901760
    %509 = vmatpush1.xpose.msra.mxu0 %v508
    %510 = vmatprep.subr.mxu0 0.0
    %511 = vmatpush2.xpose.msra.mxu0 0.0
    %512 = vmatprep.subr.mxu0 0.0
    %513 = vmatpush2.xpose.msra.mxu0 0.0
    %514 = vmatprep.subr.mxu0 0.0
    %515 = vmatpush2.xpose.msra.mxu0 0.0
    %516 = vmatprep.subr.mxu0 0.0
    %517 = vmatpush2.xpose.msra.mxu0 0.0
    %518 = vmatprep.subr.mxu0 0.0
    %519 = vmatpush2.xpose.msra.mxu0 0.0
    %520 = vmatprep.subr.mxu0 0.0
    %521 = vmatpush2.xpose.msra.mxu0 0.0
    %522 = vmatprep.subr.mxu0 0.0
    %523 = vmatpush2.xpose.msra.mxu0 0.0
    %524 = vmatprep.subr.mxu0 0.0
    %525 = vmatpush2.xpose.msra.mxu0 0.0
    %526 = vmatprep.subr.mxu0 0.0
    %527 = vmatpush2.xpose.msra.mxu0 0.0
    %528 = vmatprep.subr.mxu0 0.0
    %529 = vmatpush2.xpose.msra.mxu0 0.0
    %530 = vmatprep.subr.mxu0 0.0
    %531 = vmatpush2.xpose.msra.mxu0 0.0
    %532 = vmatprep.subr.mxu0 0.0
    %533 = vmatpush2.xpose.msra.mxu0 0.0
    %534 = vmatprep.subr.mxu0 0.0
    %535 = vmatpush2.xpose.msra.mxu0 0.0
    %536 = vmatprep.subr.mxu0 0.0
    %537 = vmatpush2.xpose.msra.mxu0 0.0
    %538 = vmatprep.subr.mxu0 0.0
    %539 = vmatpush2.xpose.msra.mxu0 0.0
    %540 = vmatprep.subr.mxu0 0.0
    %541 = vmatpush2.xpose.msra.mxu0 0.0
    %542 = vmatprep.mubr.f32.mxu0 0.0
    %v543 = vand.u32 %v66, 4294901760
    %v544 = vsub.f32 %v66, %v543
    %v545 = vand.u32 %v544, 4294901760
    %546 = vmatmul.mubr.f32.gmra.mxu0 %v545
    %v547 = vpop.f32.mrf.mxu0
    %v548 = vadd.f32 %v459, %v547
    %v549 = vpop.f32.mrf.mxu0
    %550 = vdwg.mxu0
    %551 = vmatprep.subr.mxu0 0.0
    %v552 = vand.u32 %v114, 4294901760
    %v553 = vsub.f32 %v114, %v552
    %v554 = vand.u32 %v553, 4294901760
    %555 = vmatpush1.xpose.msra.mxu0 %v554
    %556 = vmatprep.subr.mxu0 0.0
    %v557 = vand.u32 %v111, 4294901760
    %v558 = vsub.f32 %v111, %v557
    %v559 = vand.u32 %v558, 4294901760
    %560 = vmatpush1.xpose.msra.mxu0 %v559
    %561 = vmatprep.subr.mxu0 0.0
    %v562 = vand.u32 %v108, 4294901760
    %v563 = vsub.f32 %v108, %v562
    %v564 = vand.u32 %v563, 4294901760
    %565 = vmatpush1.xpose.msra.mxu0 %v564
    %566 = vmatprep.subr.mxu0 0.0
    %v567 = vand.u32 %v105, 4294901760
    %v568 = vsub.f32 %v105, %v567
    %v569 = vand.u32 %v568, 4294901760
    %570 = vmatpush1.xpose.msra.mxu0 %v569
    %571 = vmatprep.subr.mxu0 0.0
    %v572 = vand.u32 %v102, 4294901760
    %v573 = vsub.f32 %v102, %v572
    %v574 = vand.u32 %v573, 4294901760
    %575 = vmatpush1.xpose.msra.mxu0 %v574
    %576 = vmatprep.subr.mxu0 0.0
    %v577 = vand.u32 %v99, 4294901760
    %v578 = vsub.f32 %v99, %v577
    %v579 = vand.u32 %v578, 4294901760
    %580 = vmatpush1.xpose.msra.mxu0 %v579
    %581 = vmatprep.subr.mxu0 0.0
    %v582 = vand.u32 %v96, 4294901760
    %v583 = vsub.f32 %v96, %v582
    %v584 = vand.u32 %v583, 4294901760
    %585 = vmatpush1.xpose.msra.mxu0 %v584
    %586 = vmatprep.subr.mxu0 0.0
    %v587 = vand.u32 %v93, 4294901760
    %v588 = vsub.f32 %v93, %v587
    %v589 = vand.u32 %v588, 4294901760
    %590 = vmatpush1.xpose.msra.mxu0 %v589
    %591 = vmatprep.subr.mxu0 0.0
    %v592 = vand.u32 %v90, 4294901760
    %v593 = vsub.f32 %v90, %v592
    %v594 = vand.u32 %v593, 4294901760
    %595 = vmatpush1.xpose.msra.mxu0 %v594
    %596 = vmatprep.subr.mxu0 0.0
    %v597 = vand.u32 %v87, 4294901760
    %v598 = vsub.f32 %v87, %v597
    %v599 = vand.u32 %v598, 4294901760
    %600 = vmatpush1.xpose.msra.mxu0 %v599
    %601 = vmatprep.subr.mxu0 0.0
    %v602 = vand.u32 %v84, 4294901760
    %v603 = vsub.f32 %v84, %v602
    %v604 = vand.u32 %v603, 4294901760
    %605 = vmatpush1.xpose.msra.mxu0 %v604
    %606 = vmatprep.subr.mxu0 0.0
    %v607 = vand.u32 %v81, 4294901760
    %v608 = vsub.f32 %v81, %v607
    %v609 = vand.u32 %v608, 4294901760
    %610 = vmatpush1.xpose.msra.mxu0 %v609
    %611 = vmatprep.subr.mxu0 0.0
    %v612 = vand.u32 %v78, 4294901760
    %v613 = vsub.f32 %v78, %v612
    %v614 = vand.u32 %v613, 4294901760
    %615 = vmatpush1.xpose.msra.mxu0 %v614
    %616 = vmatprep.subr.mxu0 0.0
    %v617 = vand.u32 %v75, 4294901760
    %v618 = vsub.f32 %v75, %v617
    %v619 = vand.u32 %v618, 4294901760
    %620 = vmatpush1.xpose.msra.mxu0 %v619
    %621 = vmatprep.subr.mxu0 0.0
    %v622 = vand.u32 %v72, 4294901760
    %v623 = vsub.f32 %v72, %v622
    %v624 = vand.u32 %v623, 4294901760
    %625 = vmatpush1.xpose.msra.mxu0 %v624
    %626 = vmatprep.subr.mxu0 0.0
    %v627 = vand.u32 %v69, 4294901760
    %v628 = vsub.f32 %v69, %v627
    %v629 = vand.u32 %v628, 4294901760
    %630 = vmatpush1.xpose.msra.mxu0 %v629
    %631 = vmatprep.subr.mxu0 0.0
    %632 = vmatpush2.xpose.msra.mxu0 0.0
    %633 = vmatprep.subr.mxu0 0.0
    %634 = vmatpush2.xpose.msra.mxu0 0.0
    %635 = vmatprep.subr.mxu0 0.0
    %636 = vmatpush2.xpose.msra.mxu0 0.0
    %637 = vmatprep.subr.mxu0 0.0
    %638 = vmatpush2.xpose.msra.mxu0 0.0
    %639 = vmatprep.subr.mxu0 0.0
    %640 = vmatpush2.xpose.msra.mxu0 0.0
    %641 = vmatprep.subr.mxu0 0.0
    %642 = vmatpush2.xpose.msra.mxu0 0.0
    %643 = vmatprep.subr.mxu0 0.0
    %644 = vmatpush2.xpose.msra.mxu0 0.0
    %645 = vmatprep.subr.mxu0 0.0
    %646 = vmatpush2.xpose.msra.mxu0 0.0
    %647 = vmatprep.subr.mxu0 0.0
    %648 = vmatpush2.xpose.msra.mxu0 0.0
    %649 = vmatprep.subr.mxu0 0.0
    %650 = vmatpush2.xpose.msra.mxu0 0.0
    %651 = vmatprep.subr.mxu0 0.0
    %652 = vmatpush2.xpose.msra.mxu0 0.0
    %653 = vmatprep.subr.mxu0 0.0
    %654 = vmatpush2.xpose.msra.mxu0 0.0
    %655 = vmatprep.subr.mxu0 0.0
    %656 = vmatpush2.xpose.msra.mxu0 0.0
    %657 = vmatprep.subr.mxu0 0.0
    %658 = vmatpush2.xpose.msra.mxu0 0.0
    %659 = vmatprep.subr.mxu0 0.0
    %660 = vmatpush2.xpose.msra.mxu0 0.0
    %661 = vmatprep.subr.mxu0 0.0
    %662 = vmatpush2.xpose.msra.mxu0 0.0
    %663 = vmatprep.mubr.f32.mxu0 0.0
    %v664 = vand.u32 %v66, 4294901760
    %665 = vmatmul.mubr.f32.gmra.mxu0 %v664
    %v666 = vpop.f32.mrf.mxu0
    %v667 = vadd.f32 %v548, %v666
    %v668 = vpop.f32.mrf.mxu0
    %669 = vdwg.mxu0
    %670 = vmatprep.subr.mxu0 0.0
    %v671 = vand.u32 %v114, 4294901760
    %672 = vmatpush1.xpose.msra.mxu0 %v671
    %673 = vmatprep.subr.mxu0 0.0
    %v674 = vand.u32 %v111, 4294901760
    %675 = vmatpush1.xpose.msra.mxu0 %v674
    %676 = vmatprep.subr.mxu0 0.0
    %v677 = vand.u32 %v108, 4294901760
    %678 = vmatpush1.xpose.msra.mxu0 %v677
    %679 = vmatprep.subr.mxu0 0.0
    %v680 = vand.u32 %v105, 4294901760
    %681 = vmatpush1.xpose.msra.mxu0 %v680
    %682 = vmatprep.subr.mxu0 0.0
    %v683 = vand.u32 %v102, 4294901760
    %684 = vmatpush1.xpose.msra.mxu0 %v683
    %685 = vmatprep.subr.mxu0 0.0
    %v686 = vand.u32 %v99, 4294901760
    %687 = vmatpush1.xpose.msra.mxu0 %v686
    %688 = vmatprep.subr.mxu0 0.0
    %v689 = vand.u32 %v96, 4294901760
    %690 = vmatpush1.xpose.msra.mxu0 %v689
    %691 = vmatprep.subr.mxu0 0.0
    %v692 = vand.u32 %v93, 4294901760
    %693 = vmatpush1.xpose.msra.mxu0 %v692
    %694 = vmatprep.subr.mxu0 0.0
    %v695 = vand.u32 %v90, 4294901760
    %696 = vmatpush1.xpose.msra.mxu0 %v695
    %697 = vmatprep.subr.mxu0 0.0
    %v698 = vand.u32 %v87, 4294901760
    %699 = vmatpush1.xpose.msra.mxu0 %v698
    %700 = vmatprep.subr.mxu0 0.0
    %v701 = vand.u32 %v84, 4294901760
    %702 = vmatpush1.xpose.msra.mxu0 %v701
    %703 = vmatprep.subr.mxu0 0.0
    %v704 = vand.u32 %v81, 4294901760
    %705 = vmatpush1.xpose.msra.mxu0 %v704
    %706 = vmatprep.subr.mxu0 0.0
    %v707 = vand.u32 %v78, 4294901760
    %708 = vmatpush1.xpose.msra.mxu0 %v707
    %709 = vmatprep.subr.mxu0 0.0
    %v710 = vand.u32 %v75, 4294901760
    %711 = vmatpush1.xpose.msra.mxu0 %v710
    %712 = vmatprep.subr.mxu0 0.0
    %v713 = vand.u32 %v72, 4294901760
    %714 = vmatpush1.xpose.msra.mxu0 %v713
    %715 = vmatprep.subr.mxu0 0.0
    %v716 = vand.u32 %v69, 4294901760
    %717 = vmatpush1.xpose.msra.mxu0 %v716
    %718 = vmatprep.subr.mxu0 0.0
    %719 = vmatpush2.xpose.msra.mxu0 0.0
    %720 = vmatprep.subr.mxu0 0.0
    %721 = vmatpush2.xpose.msra.mxu0 0.0
    %722 = vmatprep.subr.mxu0 0.0
    %723 = vmatpush2.xpose.msra.mxu0 0.0
    %724 = vmatprep.subr.mxu0 0.0
    %725 = vmatpush2.xpose.msra.mxu0 0.0
    %726 = vmatprep.subr.mxu0 0.0
    %727 = vmatpush2.xpose.msra.mxu0 0.0
    %728 = vmatprep.subr.mxu0 0.0
    %729 = vmatpush2.xpose.msra.mxu0 0.0
    %730 = vmatprep.subr.mxu0 0.0
    %731 = vmatpush2.xpose.msra.mxu0 0.0
    %732 = vmatprep.subr.mxu0 0.0
    %733 = vmatpush2.xpose.msra.mxu0 0.0
    %734 = vmatprep.subr.mxu0 0.0
    %735 = vmatpush2.xpose.msra.mxu0 0.0
    %736 = vmatprep.subr.mxu0 0.0
    %737 = vmatpush2.xpose.msra.mxu0 0.0
    %738 = vmatprep.subr.mxu0 0.0
    %739 = vmatpush2.xpose.msra.mxu0 0.0
    %740 = vmatprep.subr.mxu0 0.0
    %741 = vmatpush2.xpose.msra.mxu0 0.0
    %742 = vmatprep.subr.mxu0 0.0
    %743 = vmatpush2.xpose.msra.mxu0 0.0
    %744 = vmatprep.subr.mxu0 0.0
    %745 = vmatpush2.xpose.msra.mxu0 0.0
    %746 = vmatprep.subr.mxu0 0.0
    %747 = vmatpush2.xpose.msra.mxu0 0.0
    %748 = vmatprep.subr.mxu0 0.0
    %749 = vmatpush2.xpose.msra.mxu0 0.0
    %750 = vmatprep.mubr.f32.mxu0 0.0
    %v751 = vand.u32 %v66, 4294901760
    %752 = vmatmul.mubr.f32.gmra.mxu0 %v751
    %v753 = vpop.f32.mrf.mxu0
    %v754 = vadd.f32 %v667, %v753
    %v755 = vpop.f32.mrf.mxu0
    %756 = vdwg.mxu0
    %757 = vst [vmem:[#allocation2] sm:$0x1] %v754
    // Predicated region
    $region14: #{mf_forward.1} parent=1 // pred_check
      _
    $region15: #{mf_forward.1} parent=1 // pred_check_branch
      %759 = sbr.rel (0) target = $region17
    $region16: #{mf_forward.1} parent=1 // pred_region
      %s761 = ssub.s32 16, 16
      %762 = vsyncadd [#allocation3], %s761
      %s764 = sshll.u32 [#allocation2], 4
      %s765 = int_to_ptr.vmem [resolvable:$true] %s764
      %767 = dma.vmem_to_hbm [thread:$0]  %s765, 16, %s3, [#allocation3]
    $region17: #{mf_forward.1} parent=1 // pred_fallthru
      _
    // Predicated region
    $region18: #{mf_forward.1} parent=1 // pred_check
      _
    $region19: #{mf_forward.1} parent=1 // pred_check_branch
      %769 = sbr.rel (0) target = $region21
    $region20: #{mf_forward.1} parent=1 // pred_region
      %770 = dma.done [#allocation3], 16
    $region21: #{mf_forward.1} parent=1 // pred_fallthru
      _
    %771 = vsyncpa [#allocation3], 1

</llo_original>
